<compile_context>
chip_gen: v6e
topology: v6e:2x2x1
jax: 0.10.0
libtpu: 0.0.40
codegen_flags: <defaults>
</compile_context>

<pallas_src>
import jax
import jax.numpy as jnp
from jax.experimental import pallas as pl
from jax.experimental.pallas import tpu as pltpu

_LANE = 1024                 # lane-dense slab width (multiple of 128)
_BLOCK_ROWS = 512            # 512 x 1024 x 4B = 2 MiB per f32 block buffer
_MIN_BLOCK_ROWS = 64         # don't accept no-pad tilings with tiny (<256 KiB) blocks
_MAX_SINGLE_BLOCK_ROWS = 512 # single-block (grid=1) no-pad cap: 2 MiB f32 buffer
_EXACT_SCALE_DIV = True      # keep torch.round(x / scale) tie-point parity exactly


# ----------------------------- Pallas kernels ------------------------------
def _calib_kernel(inv_shift_ref, x_ref, o_ref, pmax_ref):
    """y = x * (1/shift_bit); per-block partial max|x| (reduced in wrapper)."""
    x = x_ref[...].astype(jnp.float32)
    o_ref[...] = (x * inv_shift_ref[0]).astype(o_ref.dtype)
    # Per-block partial max written to its own (1, 8, 128) tile -> no
    # loop-carried scalar, grid stays "parallel" (v7x megacore-shardable).
    pmax_ref[...] = jnp.broadcast_to(jnp.max(jnp.abs(x)), pmax_ref.shape)


def _qnet_kernel(inv_shift_ref, scale_ref, x_ref, o_ref):
    x = x_ref[...].astype(jnp.float32)
    scale = scale_ref[0]
    # Quantizer.quant (symmetric int-8): clamp(round(x / scale), -128, 127).
    if _EXACT_SCALE_DIV:
        q = jnp.round(x / scale)           # exact divide: torch.round tie parity
    else:
        q = jnp.round(x * scale_ref[1])    # reciprocal fast path (<=1 ulp, v7x VALU relief)
    q = jnp.clip(q, -128.0, 127.0)
    # Right-shift: round(q / shift_bit) via reciprocal-multiply (q is a small
    # integer, never within 1 ulp of a rounding tie for sane shifts).
    q = jnp.round(q * inv_shift_ref[0])
    o_ref[...] = (q * scale).astype(o_ref.dtype)        # Quantizer.dequant


# --------------------------- layout / packing ------------------------------
def _sublane(dtype):
    """Native sublane multiple per dtype (packed dtypes pack along sublanes)."""
    return {4: 8, 2: 16, 1: 32}.get(jnp.dtype(dtype).itemsize, 8)


def _layout(n, sub):
    """Pick (rows_padded, block_rows, pad_elems) for a lane-dense (rows, _LANE) slab.

    Prefers a zero-copy layout (no pad / no unpad).  Falls back to padding only
    for truly irregular element counts.
    """
    if n % _LANE == 0:
        rows = n // _LANE
        cap = min(_BLOCK_ROWS, rows)
        if rows >= 2 * sub:
            cap = min(cap, rows // 2)          # keep grid >= 2 steps (megacore)
        cap = (cap // sub) * sub
        br = 0
        for cand in range(cap, 0, -sub):       # largest aligned divisor of rows
            if rows % cand == 0:
                br = cand
                break
        if br >= _MIN_BLOCK_ROWS:
            return rows, br, 0                 # no pad, aligned multi-block grid
        if rows <= _MAX_SINGLE_BLOCK_ROWS:
            return rows, rows, 0               # no pad, single block == full array
    # Ragged fallback: zero-pad to an aligned slab (costs 2 extra XLA copies).
    rows = pl.cdiv(n, _LANE)
    if rows >= 2 * sub:
        block_rows = min(_BLOCK_ROWS, pl.cdiv(pl.cdiv(rows, 2), sub) * sub)
    else:
        block_rows = pl.cdiv(rows, sub) * sub
    rows_p = pl.cdiv(rows, block_rows) * block_rows
    return rows_p, block_rows, rows_p * _LANE - n


def _pack(x):
    """Flatten to a lane-dense (rows_p, _LANE) slab (inside jit; pad only if needed)."""
    flat = x.reshape(-1)
    n = flat.shape[0]
    rows_p, block_rows, pad = _layout(n, _sublane(x.dtype))
    if pad:
        flat = jnp.pad(flat, (0, pad))
    return flat.reshape(rows_p, _LANE), n, block_rows, pad


def _unpack(y2, n, pad, shape):
    if pad:
        return y2.reshape(-1)[:n].reshape(shape)
    return y2.reshape(shape)                   # free: same element count, contiguous


# ------------------------------ jitted wrappers ------------------------------
@jax.jit
def _calib_forward(x, shift, prev_max):
    shape, dtype = x.shape, x.dtype
    inv_shift = (1.0 / shift).astype(jnp.float32)            # (1,) scalar
    x2, n, block_rows, pad = _pack(x)
    rows_p, lane = x2.shape
    grid = (rows_p // block_rows,)
    itemsize = jnp.dtype(dtype).itemsize
    y2, pmax = pl.pallas_call(
        _calib_kernel,
        out_shape=(jax.ShapeDtypeStruct((rows_p, lane), dtype),
                   jax.ShapeDtypeStruct((grid[0], 8, 128), jnp.float32)),
        grid=grid,
        in_specs=[
            pl.BlockSpec(memory_space=pltpu.MemorySpace.SMEM),    # 1/shift_bit
            pl.BlockSpec((block_rows, lane), lambda i: (i, 0)),   # x tile
        ],
        out_specs=(
            pl.BlockSpec((block_rows, lane), lambda i: (i, 0)),   # y tile
            pl.BlockSpec((1, 8, 128), lambda i: (i, 0, 0)),       # per-block max|x|
        ),
        compiler_params=pltpu.CompilerParams(
            dimension_semantics=("parallel",)),
        cost_estimate=pl.CostEstimate(flops=3 * n, transcendentals=0,
                                      bytes_accessed=2 * n * itemsize),
    )(inv_shift, x2)
    y = _unpack(y2, n, pad, shape)
    # Final reduce of the partial maxima (tiny) + running-stat update.
    return y, jnp.maximum(prev_max, jnp.max(pmax))


@jax.jit
def _qnet_forward(x, shift, scale_params):
    shape, dtype = x.shape, x.dtype
    inv_shift = (1.0 / shift).astype(jnp.float32)
    x2, n, block_rows, pad = _pack(x)
    rows_p, lane = x2.shape
    grid = (rows_p // block_rows,)
    itemsize = jnp.dtype(dtype).itemsize
    y2 = pl.pallas_call(
        _qnet_kernel,
        out_shape=jax.ShapeDtypeStruct((rows_p, lane), dtype),
        grid=grid,
        in_specs=[
            pl.BlockSpec(memory_space=pltpu.MemorySpace.SMEM),    # 1/shift_bit
            pl.BlockSpec(memory_space=pltpu.MemorySpace.SMEM),    # [scale, 1/scale]
            pl.BlockSpec((block_rows, lane), lambda i: (i, 0)),   # x tile
        ],
        out_specs=pl.BlockSpec((block_rows, lane), lambda i: (i, 0)),
        compiler_params=pltpu.CompilerParams(
            dimension_semantics=("parallel",)),   # pure elementwise -> megacore splits grid
        cost_estimate=pl.CostEstimate(flops=6 * n, transcendentals=0,
                                      bytes_accessed=2 * n * itemsize),
    )(inv_shift, scale_params, x2)
    return _unpack(y2, n, pad, shape)


class QuantElemRightShiftPallas:
    """JAX/Pallas port of wptq_dev QuantElemRightShift (ops_type='qnet', int-8)."""

    def __init__(self, ops_type="qnet", quant_bit="int-8"):
        self.ops_name = "ElemRightShift"
        self.ops_type = ops_type
        self.quant_bit = quant_bit
        self.quant = False
        # Quantizer state: symmetric per-tensor int-8 -> scale = max|x| / 127.
        self._max_abs = jnp.float32(0.0)      # running stat, stays on-device
        self._scale = None
        self._scale_params = None
        self.input_shape = None
        self.output_shape = None

    def celibration(self):  # (sic) matches original typo
        self._scale = max(float(self._max_abs), 1e-8) / 127.0
        self._scale_params = jnp.asarray([self._scale, 1.0 / self._scale],
                                         dtype=jnp.float32)
        self.quant = True

    def __call__(self, x, shift_bit):
        shift = jnp.asarray([shift_bit], dtype=jnp.float32)
        if self.quant:
            if self.ops_type in ("qnet", "onet"):
                return _qnet_forward(x, shift, self._scale_params)
            elif self.ops_type == "intinfer":
                # TODO(synk): PyTorch _forward_intinfer is `pass` (returns None); nothing to port.
                return None
        # calibration / fp path: y = x / shift_bit, fused running max|x| update.
        y, self._max_abs = _calib_forward(x, shift, self._max_abs)
        if self.input_shape is None or self.output_shape is None:
            self.input_shape = x.shape
            self.output_shape = y.shape
        return y


# ---------------------------------- main ------------------------------------
if __name__ == "__main__":
    key = jax.random.PRNGKey(0)
    shift_bit = 4.0

    # ---- lane-aligned tensor (no-pad fast path) ----
    x = jax.random.normal(key, (2, 4, 16, 16), dtype=jnp.float32)   # 2048 = 2 * 1024
    mod = QuantElemRightShiftPallas(ops_type="qnet", quant_bit="int-8")

    # calibration (fp) pass: y = x / shift_bit + running max|x| stat
    y_fp = jax.block_until_ready(mod(x, shift_bit))
    ref_fp = x / shift_bit
    assert y_fp.shape == x.shape
    assert jnp.allclose(y_fp, ref_fp, atol=1e-6, rtol=1e-6)
    assert jnp.allclose(mod._max_abs, jnp.max(jnp.abs(x)), rtol=1e-7, atol=0.0)

    # quantized (qnet) pass
    mod.celibration()
    y_q = jax.block_until_ready(mod(x, shift_bit))
    scale = mod._scale
    ref_q = jnp.round(jnp.clip(jnp.round(x / scale), -128.0, 127.0) / shift_bit) * scale
    assert jnp.allclose(y_q, ref_q, atol=1e-5, rtol=1e-5)

    # ---- ragged tensor (pad fallback path) ----
    xr = jax.random.normal(jax.random.PRNGKey(1), (3, 5, 7), dtype=jnp.float32)
    mod2 = QuantElemRightShiftPallas(ops_type="qnet", quant_bit="int-8")
    yr_fp = jax.block_until_ready(mod2(xr, shift_bit))
    assert yr_fp.shape == xr.shape
    assert jnp.allclose(yr_fp, xr / shift_bit, atol=1e-6, rtol=1e-6)
    assert jnp.allclose(mod2._max_abs, jnp.max(jnp.abs(xr)), rtol=1e-7, atol=0.0)
    mod2.celibration()
    yr_q = jax.block_until_ready(mod2(xr, shift_bit))
    s2 = mod2._scale
    ref_rq = jnp.round(jnp.clip(jnp.round(xr / s2), -128.0, 127.0) / shift_bit) * s2
    assert jnp.allclose(yr_q, ref_rq, atol=1e-5, rtol=1e-5)

    print("KERNEL_OK")
</pallas_src>

<mosaic_0001>
module attributes {stable_mosaic.version = 11 : i64} {
  func.func @_calib_kernel(%arg0: i32, %arg1: memref<1xf32, #tpu.memory_space<smem>>, %arg2: memref<2x1024xf32, #tpu.memory_space<vmem>>, %arg3: memref<2x1024xf32, #tpu.memory_space<vmem>>, %arg4: memref<1x8x128xf32, #tpu.memory_space<vmem>>) attributes {dimension_semantics = [#tpu.dimension_semantics<parallel>], iteration_bounds = array<i64: 1>, scalar_prefetch = 0 : i64, scratch_operands = 0 : i64, tpu.core_type = #tpu.core_type<tc>, window_params = [{transform_indices = @transform_0, window_bounds = array<i64: 1>}, {transform_indices = @transform_1, window_bounds = array<i64: 2, 1024>}, {transform_indices = @transform_2, window_bounds = array<i64: 2, 1024>}, {transform_indices = @transform_3, window_bounds = array<i64: 1, 8, 128>}]} {
    %c0 = arith.constant 0 : index
    %c0_0 = arith.constant 0 : index
    %0 = vector.load %arg2[%c0, %c0_0] : memref<2x1024xf32, #tpu.memory_space<vmem>>, vector<2x1024xf32>
    %c0_1 = arith.constant 0 : index
    %1 = memref.load %arg1[%c0_1] : memref<1xf32, #tpu.memory_space<smem>>
    %2 = vector.broadcast %1 : f32 to vector<2x1024xf32>
    %3 = arith.mulf %0, %2 : vector<2x1024xf32>
    %c0_2 = arith.constant 0 : index
    %c0_3 = arith.constant 0 : index
    %4 = vector.load %arg3[%c0_2, %c0_3] : memref<2x1024xf32, #tpu.memory_space<vmem>>, vector<2x1024xf32>
    tpu.vector_store %arg3[%c0_2, %c0_3], %3 {strides = array<i32>} : memref<2x1024xf32, #tpu.memory_space<vmem>>, vector<2x1024xf32>,
    %5 = math.absf %0 : vector<2x1024xf32>
    %6 = vector.shape_cast %5 : vector<2x1024xf32> to vector<1x2x1024xf32>
    %cst = arith.constant dense<0xFF800000> : vector<1xf32>
    %7 = vector.multi_reduction <maximumf>, %6, %cst [1, 2] : vector<1x2x1024xf32> to vector<1xf32>
    %8 = vector.shape_cast %7 : vector<1xf32> to vector<1x1x1xf32>
    %9 = vector.extract %8[0, 0, 0] : f32 from vector<1x1x1xf32>
    %10 = vector.broadcast %9 : f32 to vector<1x8x128xf32>
    %c0_4 = arith.constant 0 : index
    %c0_5 = arith.constant 0 : index
    %c0_6 = arith.constant 0 : index
    %11 = vector.load %arg4[%c0_4, %c0_5, %c0_6] : memref<1x8x128xf32, #tpu.memory_space<vmem>>, vector<1x8x128xf32>
    tpu.vector_store %arg4[%c0_4, %c0_5, %c0_6], %10 {strides = array<i32>} : memref<1x8x128xf32, #tpu.memory_space<vmem>>, vector<1x8x128xf32>,
    return
  }
  func.func @transform_0(%arg0: i32) -> i32 {
    %c0_i32 = arith.constant 0 : i32
    %c0_i32_0 = arith.constant 0 : i32
    return %c0_i32 : i32
  }
  func.func @transform_1(%arg0: i32) -> (i32, i32) {
    %c0_i32 = arith.constant 0 : i32
    %c0_i32_0 = arith.constant 0 : i32
    return %arg0, %c0_i32 : i32, i32
  }
  func.func @transform_2(%arg0: i32) -> (i32, i32) {
    %c0_i32 = arith.constant 0 : i32
    %c0_i32_0 = arith.constant 0 : i32
    return %arg0, %c0_i32 : i32, i32
  }
  func.func @transform_3(%arg0: i32) -> (i32, i32, i32) {
    %c0_i32 = arith.constant 0 : i32
    %c0_i32_0 = arith.constant 0 : i32
    %c0_i32_1 = arith.constant 0 : i32
    return %arg0, %c0_i32, %c0_i32_0 : i32, i32, i32
  }
}

</mosaic_0001>

<llo_original>
// kernel: _calib_forward.1
$region0: #{_calib_forward.1}
  #allocation0 [shape = 'u32[]', space=smem, size = 0x4, offset = 0x4, fixed_abs, tag = 'smem constant byte address 0x4 - core index']
  #allocation1 [shape = 'u32[144,128]{1,0:T(1,128)}', space=vmem, size = 0x12000, scoped, tag = 'internal scratch']
  #allocation2 [shape = 'f32[1]{0:T(128)S(6)}', space=smem, size = 0x200, scoped, tag = 'scoped memory for _calib_forward.1']
  %s0 = inlined_call_operand.<no memory space> [shape: f32[1], index: 0, kind: input, shape index: {}]
  %s1 = inlined_call_operand.vmem [shape: f32[2,1024], index: 1, kind: input, shape index: {}]
  %s2 = inlined_call_operand.vmem [shape: f32[2,1024], index: 2, kind: output, shape index: {0}]
  %s3 = inlined_call_operand.vmem [shape: f32[1,8,128], index: 3, kind: output, shape index: {1}]
  %4 = xla_tuple %s2, %s3
  %s5 = sld [smem:[#allocation0]]
  $region26: #{_calib_forward.1} parent=0
    _
  %s7 = ssub.s32 1, %s5
  %s8 = scalar_select 0, %s7, %s5
  %9 = sst [smem:[#allocation2]] %s0
  // Predicated region
  $region2: #{_calib_forward.1} parent=0 // pred_check
    _
  $region3: #{_calib_forward.1} parent=0 // pred_check_branch
    %11 = sbr.rel (0) target = $region5
  $region4: #{_calib_forward.1} parent=0 // pred_region
    _
  $region5: #{_calib_forward.1} parent=0 // pred_fallthru
    _
  // Predicated region
  $region6: #{_calib_forward.1} parent=0 // pred_check
    _
  $region7: #{_calib_forward.1} parent=0 // pred_check_branch
    %13 = sbr.rel (0) target = $region9
  $region8: #{_calib_forward.1} parent=0 // pred_region
    _
  $region9: #{_calib_forward.1} parent=0 // pred_fallthru
    _
  %v14 = vld [vmem:[%s1] sm:$0xff]
  %v15 = vld [vmem:[%s1 + $0x8] sm:$0xff]
  %s16 = sld [smem:[#allocation2]]
  %v17 = vstv %s16
  %v18 = vmul.f32 %v14, %v17
  %v19 = vmul.f32 %v15, %v17
  %20 = vst [vmem:[%s2] sm:$0xff] %v18
  %21 = vst [vmem:[%s2 + $0x8] sm:$0xff] %v19
  %v22 = vand.u32 2147483647, %v14
  %v23 = vand.u32 2147483647, %v15
  %v26 = vcombine.high %v22, %v22
  %v28 = vunpack.c.l.s4 1983009808
  %v29 = vunpack.c.0.s8 %v28
  %v30 = vlaneseq
  %v31 = vshrl.u32 %v30, 7
  %v32 = vsub.s32 %v29, %v31
  %v33 = vrot.slane %v22, %v32
  %v35 = vunpack.c.l.s4 1983009808
  %v36 = vunpack.c.0.s8 %v35
  %v37 = vlaneseq
  %v38 = vshrl.u32 %v37, 7
  %v39 = vsub.s32 %v36, %v38
  %v40 = vrot.slane %v26, %v39
  %v41 = vcombine.high %v33, %v33
  %v42 = vcombine.high %v40, %v40
  %v43 = vcombine.high %v23, %v23
  %v45 = vunpack.c.l.s4 1983009808
  %v46 = vunpack.c.0.s8 %v45
  %v47 = vlaneseq
  %v48 = vshrl.u32 %v47, 7
  %v49 = vsub.s32 %v46, %v48
  %v50 = vrot.slane %v23, %v49
  %v52 = vunpack.c.l.s4 1983009808
  %v53 = vunpack.c.0.s8 %v52
  %v54 = vlaneseq
  %v55 = vshrl.u32 %v54, 7
  %v56 = vsub.s32 %v53, %v55
  %v57 = vrot.slane %v43, %v56
  %v58 = vcombine.high %v50, %v50
  %v59 = vcombine.high %v57, %v57
  %vm68 = vcmask 1041408
  %v69 = vsel %vm68, %v33, -inf
  %v70 = vsel %vm68, %v41, -inf
  %v71 = vsel %vm68, %v40, -inf
  %v72 = vsel %vm68, %v42, -inf
  %v73 = vsel %vm68, %v50, -inf
  %v74 = vmax.f32 %v69, %v73
  %v75 = vsel %vm68, %v58, -inf
  %v76 = vmax.f32 %v70, %v75
  %v77 = vsel %vm68, %v57, -inf
  %v78 = vmax.f32 %v71, %v77
  %v79 = vsel %vm68, %v59, -inf
  %v80 = vmax.f32 %v72, %v79
  %v81 = vmax.f32 %v74, %v76
  %v82 = vmax.f32 %v78, %v80
  %v83 = vmax.f32 %v81, %v82
  %84 = vmax.xlane.f32.xlu0 %v83
  %v85 = vpop.xlane.xlu0 %84
  %v86 = vrot.slane %v85, 4
  %v87 = vmax.f32 %v85, %v86
  %v88 = vrot.slane %v87, 2
  %v89 = vmax.f32 %v87, %v88
  %v90 = vrot.slane %v89, 1
  %v91 = vmax.f32 %v89, %v90
  %s92 = vtos %v91
  %v93 = vstv %s92
  %94 = vst [vmem:[%s3] sm:$0xff] %v93
  // Predicated region
  $region10: #{_calib_forward.1} parent=0 // pred_check
    _
  $region11: #{_calib_forward.1} parent=0 // pred_check_branch
    %96 = sbr.rel (0) target = $region13
  $region12: #{_calib_forward.1} parent=0 // pred_region
    _
  $region13: #{_calib_forward.1} parent=0 // pred_fallthru
    _
  // Predicated region
  $region14: #{_calib_forward.1} parent=0 // pred_check
    _
  $region15: #{_calib_forward.1} parent=0 // pred_check_branch
    %98 = sbr.rel (0) target = $region17
  $region16: #{_calib_forward.1} parent=0 // pred_region
    _
  $region17: #{_calib_forward.1} parent=0 // pred_fallthru
    _
  // Predicated region
  $region18: #{_calib_forward.1} parent=0 // pred_check
    _
  $region19: #{_calib_forward.1} parent=0 // pred_check_branch
    %100 = sbr.rel (0) target = $region21
  $region20: #{_calib_forward.1} parent=0 // pred_region
    _
  $region21: #{_calib_forward.1} parent=0 // pred_fallthru
    _
  // Predicated region
  $region22: #{_calib_forward.1} parent=0 // pred_check
    _
  $region23: #{_calib_forward.1} parent=0 // pred_check_branch
    %102 = sbr.rel (0) target = $region25
  $region24: #{_calib_forward.1} parent=0 // pred_region
    _
  $region25: #{_calib_forward.1} parent=0 // pred_fallthru
    _

</llo_original>
